<compile_context>
chip_gen: v7x
topology: tpu7x:2x2x1
jax: 0.10.0
libtpu: 0.0.40
codegen_flags: <defaults>
</compile_context>

<pallas_src>
import jax
import jax.numpy as jnp
import numpy as np
from jax.experimental import pallas as pl
from jax.experimental.pallas import tpu as pltpu


def fiblock_kernel(x_ref, y_ref, w_ref, b_ref, o_ref):
    # x_ref, y_ref, o_ref : (Bblk, C, HW)  channels on sublanes, spatial on lanes
    # w_ref               : (4C, 2C) packed weights
    #                         rows [0,2C)  : block-diag fused SE weight [[Ax,0],[0,Ay]]
    #                         rows [2C,3C) : wcx (cols [0,C))
    #                         rows [3C,4C) : wcy (cols [0,C))
    # b_ref               : (3C, 1) packed biases [cx; cy; bc]
    nb, C, HW = x_ref.shape
    inv_hw = 1.0 / HW

    # Packed parameters: loaded once, reused for every batch element in the block.
    w_se = w_ref[0:2 * C, :]                # (2C, 2C) fused SE weight (block diag)
    wcx = w_ref[2 * C:3 * C, 0:C]           # (C, C)   concat-conv weight, x half
    wcy = w_ref[3 * C:4 * C, 0:C]           # (C, C)   concat-conv weight, y half
    c_se = b_ref[0:2 * C, :]                # (2C, 1)  fused SE bias [cx; cy]
    bc = b_ref[2 * C:3 * C, :]              # (C, 1)   concat-conv bias

    # Identity mask used to turn a (C,1) gate column into a (1,C) row
    # (a tiny "transpose" built only from iota / where / sublane-reduce).
    eye = (jax.lax.broadcasted_iota(jnp.int32, (C, C), 0)
           == jax.lax.broadcasted_iota(jnp.int32, (C, C), 1))

    for bb in range(nb):                    # static unroll over batch in this block
        x = x_ref[bb]                       # (C, HW)
        y = y_ref[bb]                       # (C, HW)

        # Global average pool (lane reduce).  Pooling commutes with the 1x1 convs,
        # so the SE path only ever sees (C,1) vectors.
        sx = jnp.sum(x, axis=-1, keepdims=True) * inv_hw        # (C, 1)
        sy = jnp.sum(y, axis=-1, keepdims=True) * inv_hw        # (C, 1)
        s = jnp.concatenate([sx, sy], axis=0)                   # (2C, 1)

        # Whole SE chain (conv1x1 -> fc) in a single MXU push + sigmoid.
        z = jnp.dot(w_se, s, preferred_element_type=jnp.float32) + c_se
        g = 1.0 / (1.0 + jnp.exp(-z))                           # [gx; gy] (2C, 1)
        gx_col = g[0:C, :]                                      # sigmoid(fc_x(..))
        gy_col = g[C:2 * C, :]                                  # sigmoid(fc_y(..))
        gx_row = jnp.sum(jnp.where(eye, gx_col, 0.0), axis=0, keepdims=True)  # (1,C)
        gy_row = jnp.sum(jnp.where(eye, gy_col, 0.0), axis=0, keepdims=True)  # (1,C)

        # Fold the gates into the concat-conv weights (scale columns):
        #   wcx@(x*gy) + wcy@(y*gx) == (wcx*gy_row)@x + (wcy*gx_row)@y
        wcx_g = wcx * gy_row                                    # (C, C)
        wcy_g = wcy * gx_row                                    # (C, C)

        out = jnp.dot(wcx_g, x, preferred_element_type=jnp.float32)
        out = out + jnp.dot(wcy_g, y, preferred_element_type=jnp.float32)
        out = out + bc
        o_ref[bb] = out.astype(o_ref.dtype)


def _pack_params(params, C):
    """Fuse the SE chain host-side and pack all 13 tensors into 2 arrays."""
    wx, bx = params["wx"], params["bx"]          # conv1x1_x
    wy, by = params["wy"], params["by"]          # conv1x1_y
    wfx, bfx = params["wfx"], params["bfx"]      # fc_x
    wfy, bfy = params["wfy"], params["bfy"]      # fc_y
    wc, bc = params["wc"], params["bc"]          # conv1x1_concat

    # fc(conv1x1(pool(x))) == (Wf@W) @ pool(x) + (Wf@b + bf)   (exact rewrite)
    ax = wfx @ wx
    ay = wfy @ wy
    cx = wfx @ bx + bfx
    cy = wfy @ by + bfy

    w_all = jnp.zeros((4 * C, 2 * C), jnp.float32)
    w_all = w_all.at[0:C, 0:C].set(ax)                    # block-diag SE weight
    w_all = w_all.at[C:2 * C, C:2 * C].set(ay)
    w_all = w_all.at[2 * C:3 * C, 0:C].set(wc[:, :C])     # concat-conv, x half
    w_all = w_all.at[3 * C:4 * C, 0:C].set(wc[:, C:])     # concat-conv, y half

    b_all = jnp.zeros((3 * C, 1), jnp.float32)
    b_all = b_all.at[0:C, 0].set(cx)
    b_all = b_all.at[C:2 * C, 0].set(cy)
    b_all = b_all.at[2 * C:3 * C, 0].set(bc)
    return w_all, b_all


def fiblock_pallas(x, y, params, *, fold_batch=True):
    """x, y: [B, C, H, W] float32.  params: dict of FIBlock weights/biases.

    fold_batch=True : single grid step, batch unrolled in-kernel (best on
                      single-TensorCore chips, v5e/v6e).
    fold_batch=False: grid=(B,) with "parallel" semantics (engages the second
                      TensorCore on v7x when B >= 2).
    """
    B, C, H, W = x.shape
    HW = H * W
    w_all, b_all = _pack_params(params, C)

    # Contiguous NCHW -> (B, C, HW): metadata-only reshape (no HBM copy).
    xf = x.reshape(B, C, HW)
    yf = y.reshape(B, C, HW)

    if fold_batch:
        grid = (1,)
        act_spec = pl.BlockSpec((B, C, HW), lambda i: (0, 0, 0))
        semantics = ("arbitrary",)
    else:
        grid = (B,)
        act_spec = pl.BlockSpec((1, C, HW), lambda b: (b, 0, 0))
        semantics = ("parallel",)

    w_spec = pl.BlockSpec((4 * C, 2 * C), lambda b: (0, 0))
    b_spec = pl.BlockSpec((3 * C, 1), lambda b: (0, 0))

    out = pl.pallas_call(
        fiblock_kernel,
        out_shape=jax.ShapeDtypeStruct((B, C, HW), jnp.float32),
        grid_spec=pltpu.PrefetchScalarGridSpec(
            num_scalar_prefetch=0,
            grid=grid,
            in_specs=[act_spec, act_spec, w_spec, b_spec],
            out_specs=act_spec,
        ),
        compiler_params=pltpu.CompilerParams(
            dimension_semantics=semantics,
            vmem_limit_bytes=32 * 1024 * 1024),
    )(xf, yf, w_all, b_all)

    return out.reshape(B, C, H, W)


def fiblock_ref(x, y, params):
    """Pure-JAX reference matching the PyTorch FIBlock.forward semantics."""
    wx, bx = params["wx"], params["bx"]
    wy, by = params["wy"], params["by"]
    wfx, bfx = params["wfx"], params["bfx"]
    wfy, bfy = params["wfy"], params["bfy"]
    wc, bc = params["wc"], params["bc"]

    x_conv = jnp.einsum("oi,bihw->bohw", wx, x) + bx[None, :, None, None]
    y_conv = jnp.einsum("oi,bihw->bohw", wy, y) + by[None, :, None, None]
    x_pool = jnp.mean(x_conv, axis=(2, 3))                  # (B, C)
    y_pool = jnp.mean(y_conv, axis=(2, 3))                  # (B, C)
    x_fc = x_pool @ wfx.T + bfx
    y_fc = y_pool @ wfy.T + bfy
    gx = jax.nn.sigmoid(x_fc)                               # (B, C)
    gy = jax.nn.sigmoid(y_fc)
    x_att = x * gy[:, :, None, None]
    y_att = y * gx[:, :, None, None]
    cat = jnp.concatenate([x_att, y_att], axis=1)           # (B, 2C, H, W)
    return jnp.einsum("oi,bihw->bohw", wc, cat) + bc[None, :, None, None]


if __name__ == "__main__":
    # Small deterministic config: batch=2, channels=16, spatial=16x16.
    # (HW = 256 keeps the output lane-dense; C = 16 is sublane-aligned.)
    B, C, H, W = 2, 16, 16, 16

    key = jax.random.PRNGKey(0)
    keys = jax.random.split(key, 12)

    params = {
        "wx":  jax.random.normal(keys[0], (C, C), jnp.float32) * 0.1,
        "bx":  jax.random.normal(keys[1], (C,), jnp.float32) * 0.1,
        "wy":  jax.random.normal(keys[2], (C, C), jnp.float32) * 0.1,
        "by":  jax.random.normal(keys[3], (C,), jnp.float32) * 0.1,
        "wfx": jax.random.normal(keys[4], (C, C), jnp.float32) * 0.1,
        "bfx": jax.random.normal(keys[5], (C,), jnp.float32) * 0.1,
        "wfy": jax.random.normal(keys[6], (C, C), jnp.float32) * 0.1,
        "bfy": jax.random.normal(keys[7], (C,), jnp.float32) * 0.1,
        "wc":  jax.random.normal(keys[8], (C, 2 * C), jnp.float32) * 0.1,
        "bc":  jax.random.normal(keys[9], (C,), jnp.float32) * 0.1,
    }
    x = jax.random.normal(keys[10], (B, C, H, W), jnp.float32)
    y = jax.random.normal(keys[11], (B, C, H, W), jnp.float32)

    ref = jax.block_until_ready(fiblock_ref(x, y, params))

    # Batch-folded single-step variant (v5e/v6e-friendly default).
    out_folded = jax.block_until_ready(fiblock_pallas(x, y, params, fold_batch=True))
    np.testing.assert_allclose(np.asarray(out_folded), np.asarray(ref),
                               rtol=1e-5, atol=1e-5)

    # Parallel-over-batch variant (engages the second TensorCore on v7x).
    out_parallel = jax.block_until_ready(fiblock_pallas(x, y, params, fold_batch=False))
    np.testing.assert_allclose(np.asarray(out_parallel), np.asarray(ref),
                               rtol=1e-5, atol=1e-5)

    print("KERNEL_OK")
</pallas_src>

<mosaic_0001>
module attributes {stable_mosaic.version = 11 : i64} {
  func.func @fiblock_kernel(%arg0: i32, %arg1: memref<2x16x256xf32, #tpu.memory_space<vmem>>, %arg2: memref<2x16x256xf32, #tpu.memory_space<vmem>>, %arg3: memref<64x32xf32, #tpu.memory_space<vmem>>, %arg4: memref<48x1xf32, #tpu.memory_space<vmem>>, %arg5: memref<2x16x256xf32, #tpu.memory_space<vmem>>) attributes {dimension_semantics = [#tpu.dimension_semantics<arbitrary>], iteration_bounds = array<i64: 1>, scalar_prefetch = 0 : i64, scratch_operands = 0 : i64, tpu.core_type = #tpu.core_type<tc>, window_params = [{pipeline_mode = #tpu.pipeline_mode<synchronous>, transform_indices = @transform_0, window_bounds = array<i64: 2, 16, 256>}, {pipeline_mode = #tpu.pipeline_mode<synchronous>, transform_indices = @transform_1, window_bounds = array<i64: 2, 16, 256>}, {pipeline_mode = #tpu.pipeline_mode<synchronous>, transform_indices = @transform_2, window_bounds = array<i64: 64, 32>}, {pipeline_mode = #tpu.pipeline_mode<synchronous>, transform_indices = @transform_3, window_bounds = array<i64: 48, 1>}, {pipeline_mode = #tpu.pipeline_mode<synchronous>, transform_indices = @transform_4, window_bounds = array<i64: 2, 16, 256>}]} {
    %c0 = arith.constant 0 : index
    %c0_0 = arith.constant 0 : index
    %0 = vector.load %arg3[%c0, %c0_0] : memref<64x32xf32, #tpu.memory_space<vmem>>, vector<32x32xf32>
    %c32 = arith.constant 32 : index
    %c0_1 = arith.constant 0 : index
    %1 = vector.load %arg3[%c32, %c0_1] : memref<64x32xf32, #tpu.memory_space<vmem>>, vector<16x16xf32>
    %c48 = arith.constant 48 : index
    %c0_2 = arith.constant 0 : index
    %2 = vector.load %arg3[%c48, %c0_2] : memref<64x32xf32, #tpu.memory_space<vmem>>, vector<16x16xf32>
    %c0_3 = arith.constant 0 : index
    %c0_4 = arith.constant 0 : index
    %3 = vector.load %arg4[%c0_3, %c0_4] : memref<48x1xf32, #tpu.memory_space<vmem>>, vector<32x1xf32>
    %c32_5 = arith.constant 32 : index
    %c0_6 = arith.constant 0 : index
    %4 = vector.load %arg4[%c32_5, %c0_6] : memref<48x1xf32, #tpu.memory_space<vmem>>, vector<16x1xf32>
    %5 = tpu.iota {dimensions = array<i32: 0>} : vector<16x16xi32>
    %6 = tpu.iota {dimensions = array<i32: 1>} : vector<16x16xi32>
    %7 = arith.cmpi eq, %5, %6 : vector<16x16xi32>
    %c0_7 = arith.constant 0 : index
    %c0_8 = arith.constant 0 : index
    %c0_9 = arith.constant 0 : index
    %8 = vector.load %arg1[%c0_7, %c0_8, %c0_9] : memref<2x16x256xf32, #tpu.memory_space<vmem>>, vector<1x16x256xf32>
    %9 = vector.shape_cast %8 : vector<1x16x256xf32> to vector<16x256xf32>
    %c0_10 = arith.constant 0 : index
    %c0_11 = arith.constant 0 : index
    %c0_12 = arith.constant 0 : index
    %10 = vector.load %arg2[%c0_10, %c0_11, %c0_12] : memref<2x16x256xf32, #tpu.memory_space<vmem>>, vector<1x16x256xf32>
    %11 = vector.shape_cast %10 : vector<1x16x256xf32> to vector<16x256xf32>
    %cst = arith.constant dense<0.000000e+00> : vector<16xf32>
    %12 = vector.multi_reduction <add>, %9, %cst [1] : vector<16x256xf32> to vector<16xf32>
    %13 = vector.shape_cast %12 : vector<16xf32> to vector<16x1xf32>
    %cst_13 = arith.constant 3.906250e-03 : f32
    %14 = vector.broadcast %cst_13 : f32 to vector<16x1xf32>
    %15 = arith.mulf %13, %14 : vector<16x1xf32>
    %cst_14 = arith.constant dense<0.000000e+00> : vector<16xf32>
    %16 = vector.multi_reduction <add>, %11, %cst_14 [1] : vector<16x256xf32> to vector<16xf32>
    %17 = vector.shape_cast %16 : vector<16xf32> to vector<16x1xf32>
    %cst_15 = arith.constant 3.906250e-03 : f32
    %18 = vector.broadcast %cst_15 : f32 to vector<16x1xf32>
    %19 = arith.mulf %17, %18 : vector<16x1xf32>
    %20 = tpu.concatenate %15, %19 in 0 : vector<16x1xf32>, vector<16x1xf32> -> vector<32x1xf32>
    %cst_16 = arith.constant dense<0.000000e+00> : vector<32x1xf32>
    %21 = tpu.matmul %0, %20, %cst_16 {dimension_numbers = #tpu.dot_dimension_numbers<[1], [0], [0], [1], [0, 0, 1, 1], [], []>} : vector<32x32xf32>, vector<32x1xf32>, vector<32x1xf32> -> vector<32x1xf32>
    %22 = arith.addf %21, %3 : vector<32x1xf32>
    %cst_17 = arith.constant 0.000000e+00 : f32
    %23 = vector.broadcast %cst_17 : f32 to vector<32x1xf32>
    %24 = arith.subf %23, %22 : vector<32x1xf32>
    %25 = math.exp %24 : vector<32x1xf32>
    %cst_18 = arith.constant 1.000000e+00 : f32
    %26 = vector.broadcast %cst_18 : f32 to vector<32x1xf32>
    %27 = arith.addf %26, %25 : vector<32x1xf32>
    %cst_19 = arith.constant 1.000000e+00 : f32
    %28 = vector.broadcast %cst_19 : f32 to vector<32x1xf32>
    %29 = arith.divf %28, %27 : vector<32x1xf32>
    %30 = vector.extract_strided_slice %29 {offsets = [0, 0], sizes = [16, 1], strides = [1, 1]} : vector<32x1xf32> to vector<16x1xf32>
    %31 = vector.extract_strided_slice %29 {offsets = [16, 0], sizes = [16, 1], strides = [1, 1]} : vector<32x1xf32> to vector<16x1xf32>
    %cst_20 = arith.constant 0.000000e+00 : f32
    %32 = vector.shape_cast %30 : vector<16x1xf32> to vector<16x1xf32>
    %33 = vector.broadcast %32 : vector<16x1xf32> to vector<16x16xf32>
    %34 = vector.broadcast %cst_20 : f32 to vector<16x16xf32>
    %35 = arith.select %7, %33, %34 : vector<16x16xi1>, vector<16x16xf32>
    %cst_21 = arith.constant dense<0.000000e+00> : vector<16xf32>
    %36 = vector.multi_reduction <add>, %35, %cst_21 [0] : vector<16x16xf32> to vector<16xf32>
    %37 = vector.shape_cast %36 : vector<16xf32> to vector<1x16xf32>
    %cst_22 = arith.constant 0.000000e+00 : f32
    %38 = vector.shape_cast %31 : vector<16x1xf32> to vector<16x1xf32>
    %39 = vector.broadcast %38 : vector<16x1xf32> to vector<16x16xf32>
    %40 = vector.broadcast %cst_22 : f32 to vector<16x16xf32>
    %41 = arith.select %7, %39, %40 : vector<16x16xi1>, vector<16x16xf32>
    %cst_23 = arith.constant dense<0.000000e+00> : vector<16xf32>
    %42 = vector.multi_reduction <add>, %41, %cst_23 [0] : vector<16x16xf32> to vector<16xf32>
    %43 = vector.shape_cast %42 : vector<16xf32> to vector<1x16xf32>
    %44 = vector.broadcast %43 : vector<1x16xf32> to vector<16x16xf32>
    %45 = arith.mulf %1, %44 : vector<16x16xf32>
    %46 = vector.broadcast %37 : vector<1x16xf32> to vector<16x16xf32>
    %47 = arith.mulf %2, %46 : vector<16x16xf32>
    %cst_24 = arith.constant dense<0.000000e+00> : vector<16x256xf32>
    %48 = tpu.matmul %45, %9, %cst_24 {dimension_numbers = #tpu.dot_dimension_numbers<[1], [0], [0], [1], [0, 0, 1, 1], [], []>} : vector<16x16xf32>, vector<16x256xf32>, vector<16x256xf32> -> vector<16x256xf32>
    %cst_25 = arith.constant dense<0.000000e+00> : vector<16x256xf32>
    %49 = tpu.matmul %47, %11, %cst_25 {dimension_numbers = #tpu.dot_dimension_numbers<[1], [0], [0], [1], [0, 0, 1, 1], [], []>} : vector<16x16xf32>, vector<16x256xf32>, vector<16x256xf32> -> vector<16x256xf32>
    %50 = arith.addf %48, %49 : vector<16x256xf32>
    %51 = vector.broadcast %4 : vector<16x1xf32> to vector<16x256xf32>
    %52 = arith.addf %50, %51 : vector<16x256xf32>
    %c0_26 = arith.constant 0 : index
    %c0_27 = arith.constant 0 : index
    %c0_28 = arith.constant 0 : index
    %53 = vector.load %arg5[%c0_26, %c0_27, %c0_28] : memref<2x16x256xf32, #tpu.memory_space<vmem>>, vector<1x16x256xf32>
    %54 = vector.shape_cast %53 : vector<1x16x256xf32> to vector<16x256xf32>
    %55 = vector.shape_cast %52 : vector<16x256xf32> to vector<1x16x256xf32>
    tpu.vector_store %arg5[%c0_26, %c0_27, %c0_28], %55 {strides = array<i32>} : memref<2x16x256xf32, #tpu.memory_space<vmem>>, vector<1x16x256xf32>,
    %c1 = arith.constant 1 : index
    %c0_29 = arith.constant 0 : index
    %c0_30 = arith.constant 0 : index
    %56 = vector.load %arg1[%c1, %c0_29, %c0_30] : memref<2x16x256xf32, #tpu.memory_space<vmem>>, vector<1x16x256xf32>
    %57 = vector.shape_cast %56 : vector<1x16x256xf32> to vector<16x256xf32>
    %c1_31 = arith.constant 1 : index
    %c0_32 = arith.constant 0 : index
    %c0_33 = arith.constant 0 : index
    %58 = vector.load %arg2[%c1_31, %c0_32, %c0_33] : memref<2x16x256xf32, #tpu.memory_space<vmem>>, vector<1x16x256xf32>
    %59 = vector.shape_cast %58 : vector<1x16x256xf32> to vector<16x256xf32>
    %cst_34 = arith.constant dense<0.000000e+00> : vector<16xf32>
    %60 = vector.multi_reduction <add>, %57, %cst_34 [1] : vector<16x256xf32> to vector<16xf32>
    %61 = vector.shape_cast %60 : vector<16xf32> to vector<16x1xf32>
    %cst_35 = arith.constant 3.906250e-03 : f32
    %62 = vector.broadcast %cst_35 : f32 to vector<16x1xf32>
    %63 = arith.mulf %61, %62 : vector<16x1xf32>
    %cst_36 = arith.constant dense<0.000000e+00> : vector<16xf32>
    %64 = vector.multi_reduction <add>, %59, %cst_36 [1] : vector<16x256xf32> to vector<16xf32>
    %65 = vector.shape_cast %64 : vector<16xf32> to vector<16x1xf32>
    %cst_37 = arith.constant 3.906250e-03 : f32
    %66 = vector.broadcast %cst_37 : f32 to vector<16x1xf32>
    %67 = arith.mulf %65, %66 : vector<16x1xf32>
    %68 = tpu.concatenate %63, %67 in 0 : vector<16x1xf32>, vector<16x1xf32> -> vector<32x1xf32>
    %cst_38 = arith.constant dense<0.000000e+00> : vector<32x1xf32>
    %69 = tpu.matmul %0, %68, %cst_38 {dimension_numbers = #tpu.dot_dimension_numbers<[1], [0], [0], [1], [0, 0, 1, 1], [], []>} : vector<32x32xf32>, vector<32x1xf32>, vector<32x1xf32> -> vector<32x1xf32>
    %70 = arith.addf %69, %3 : vector<32x1xf32>
    %cst_39 = arith.constant 0.000000e+00 : f32
    %71 = vector.broadcast %cst_39 : f32 to vector<32x1xf32>
    %72 = arith.subf %71, %70 : vector<32x1xf32>
    %73 = math.exp %72 : vector<32x1xf32>
    %cst_40 = arith.constant 1.000000e+00 : f32
    %74 = vector.broadcast %cst_40 : f32 to vector<32x1xf32>
    %75 = arith.addf %74, %73 : vector<32x1xf32>
    %cst_41 = arith.constant 1.000000e+00 : f32
    %76 = vector.broadcast %cst_41 : f32 to vector<32x1xf32>
    %77 = arith.divf %76, %75 : vector<32x1xf32>
    %78 = vector.extract_strided_slice %77 {offsets = [0, 0], sizes = [16, 1], strides = [1, 1]} : vector<32x1xf32> to vector<16x1xf32>
    %79 = vector.extract_strided_slice %77 {offsets = [16, 0], sizes = [16, 1], strides = [1, 1]} : vector<32x1xf32> to vector<16x1xf32>
    %cst_42 = arith.constant 0.000000e+00 : f32
    %80 = vector.shape_cast %78 : vector<16x1xf32> to vector<16x1xf32>
    %81 = vector.broadcast %80 : vector<16x1xf32> to vector<16x16xf32>
    %82 = vector.broadcast %cst_42 : f32 to vector<16x16xf32>
    %83 = arith.select %7, %81, %82 : vector<16x16xi1>, vector<16x16xf32>
    %cst_43 = arith.constant dense<0.000000e+00> : vector<16xf32>
    %84 = vector.multi_reduction <add>, %83, %cst_43 [0] : vector<16x16xf32> to vector<16xf32>
    %85 = vector.shape_cast %84 : vector<16xf32> to vector<1x16xf32>
    %cst_44 = arith.constant 0.000000e+00 : f32
    %86 = vector.shape_cast %79 : vector<16x1xf32> to vector<16x1xf32>
    %87 = vector.broadcast %86 : vector<16x1xf32> to vector<16x16xf32>
    %88 = vector.broadcast %cst_44 : f32 to vector<16x16xf32>
    %89 = arith.select %7, %87, %88 : vector<16x16xi1>, vector<16x16xf32>
    %cst_45 = arith.constant dense<0.000000e+00> : vector<16xf32>
    %90 = vector.multi_reduction <add>, %89, %cst_45 [0] : vector<16x16xf32> to vector<16xf32>
    %91 = vector.shape_cast %90 : vector<16xf32> to vector<1x16xf32>
    %92 = vector.broadcast %91 : vector<1x16xf32> to vector<16x16xf32>
    %93 = arith.mulf %1, %92 : vector<16x16xf32>
    %94 = vector.broadcast %85 : vector<1x16xf32> to vector<16x16xf32>
    %95 = arith.mulf %2, %94 : vector<16x16xf32>
    %cst_46 = arith.constant dense<0.000000e+00> : vector<16x256xf32>
    %96 = tpu.matmul %93, %57, %cst_46 {dimension_numbers = #tpu.dot_dimension_numbers<[1], [0], [0], [1], [0, 0, 1, 1], [], []>} : vector<16x16xf32>, vector<16x256xf32>, vector<16x256xf32> -> vector<16x256xf32>
    %cst_47 = arith.constant dense<0.000000e+00> : vector<16x256xf32>
    %97 = tpu.matmul %95, %59, %cst_47 {dimension_numbers = #tpu.dot_dimension_numbers<[1], [0], [0], [1], [0, 0, 1, 1], [], []>} : vector<16x16xf32>, vector<16x256xf32>, vector<16x256xf32> -> vector<16x256xf32>
    %98 = arith.addf %96, %97 : vector<16x256xf32>
    %99 = vector.broadcast %4 : vector<16x1xf32> to vector<16x256xf32>
    %100 = arith.addf %98, %99 : vector<16x256xf32>
    %c1_48 = arith.constant 1 : index
    %c0_49 = arith.constant 0 : index
    %c0_50 = arith.constant 0 : index
    %101 = vector.load %arg5[%c1_48, %c0_49, %c0_50] : memref<2x16x256xf32, #tpu.memory_space<vmem>>, vector<1x16x256xf32>
    %102 = vector.shape_cast %101 : vector<1x16x256xf32> to vector<16x256xf32>
    %103 = vector.shape_cast %100 : vector<16x256xf32> to vector<1x16x256xf32>
    tpu.vector_store %arg5[%c1_48, %c0_49, %c0_50], %103 {strides = array<i32>} : memref<2x16x256xf32, #tpu.memory_space<vmem>>, vector<1x16x256xf32>,
    return
  }
  func.func @transform_0(%arg0: i32) -> (i32, i32, i32) {
    %c0_i32 = arith.constant 0 : i32
    %c0_i32_0 = arith.constant 0 : i32
    %c0_i32_1 = arith.constant 0 : i32
    %c0_i32_2 = arith.constant 0 : i32
    return %c0_i32, %c0_i32_0, %c0_i32_1 : i32, i32, i32
  }
  func.func @transform_1(%arg0: i32) -> (i32, i32, i32) {
    %c0_i32 = arith.constant 0 : i32
    %c0_i32_0 = arith.constant 0 : i32
    %c0_i32_1 = arith.constant 0 : i32
    %c0_i32_2 = arith.constant 0 : i32
    return %c0_i32, %c0_i32_0, %c0_i32_1 : i32, i32, i32
  }
  func.func @transform_2(%arg0: i32) -> (i32, i32) {
    %c0_i32 = arith.constant 0 : i32
    %c0_i32_0 = arith.constant 0 : i32
    %c0_i32_1 = arith.constant 0 : i32
    return %c0_i32, %c0_i32_0 : i32, i32
  }
  func.func @transform_3(%arg0: i32) -> (i32, i32) {
    %c0_i32 = arith.constant 0 : i32
    %c0_i32_0 = arith.constant 0 : i32
    %c0_i32_1 = arith.constant 0 : i32
    return %c0_i32, %c0_i32_0 : i32, i32
  }
  func.func @transform_4(%arg0: i32) -> (i32, i32, i32) {
    %c0_i32 = arith.constant 0 : i32
    %c0_i32_0 = arith.constant 0 : i32
    %c0_i32_1 = arith.constant 0 : i32
    %c0_i32_2 = arith.constant 0 : i32
    return %c0_i32, %c0_i32_0, %c0_i32_1 : i32, i32, i32
  }
}

</mosaic_0001>

<llo_original>
// kernel: tpu_custom_call.1
$region0: #{tpu_custom_call.1}
  #allocation0 [shape = 'u32[]', space=smem, size = 0x4, offset = 0x4, fixed_abs, tag = 'smem constant byte address 0x4 - core index']
  #allocation1 [shape = 'u32[144,128]{1,0:T(1,128)}', space=vmem, size = 0x12000, scoped, tag = 'internal scratch']
  %s0 = inlined_call_operand.vmem [shape: f32[2,16,256], index: 0, kind: input, shape index: {}]
  %s1 = inlined_call_operand.vmem [shape: f32[2,16,256], index: 1, kind: input, shape index: {}]
  %s2 = inlined_call_operand.vmem [shape: f32[64,32], index: 2, kind: input, shape index: {}]
  %s3 = inlined_call_operand.vmem [shape: f32[48,1], index: 3, kind: input, shape index: {}]
  %s4 = inlined_call_operand.hbm [shape: f32[2,16,256], index: 4, kind: output, shape index: {}]
  %s5 = sld [smem:[#allocation0]]
  $region26: #{tpu_custom_call.1} parent=0
    _
  %s7 = ssub.s32 1, %s5
  %s8 = scalar_select 0, %s7, %s5
  $region1: #{tpu_custom_call.1} parent=0
    #allocation2 [shape = 'u8[32768]{0}', space=vmem, size = 0x8000, scoped, tag = 'output window, operand 0, single buffered']
    #allocation3 [shape = 's32[1]{0}', space=sflag, size = 0x4, scoped, tag = 'scoped memory for tpu_custom_call.1']
    %9 = vsyncpa [#allocation3], 0
    // Predicated region
    $region2: #{tpu_custom_call.1} parent=1 // pred_check
      _
    $region3: #{tpu_custom_call.1} parent=1 // pred_check_branch
      %11 = sbr.rel (0) target = $region5
    $region4: #{tpu_custom_call.1} parent=1 // pred_region
      _
    $region5: #{tpu_custom_call.1} parent=1 // pred_fallthru
      _
    // Predicated region
    $region6: #{tpu_custom_call.1} parent=1 // pred_check
      _
    $region7: #{tpu_custom_call.1} parent=1 // pred_check_branch
      %13 = sbr.rel (0) target = $region9
    $region8: #{tpu_custom_call.1} parent=1 // pred_region
      _
    $region9: #{tpu_custom_call.1} parent=1 // pred_fallthru
      _
    // Predicated region
    $region10: #{tpu_custom_call.1} parent=1 // pred_check
      _
    $region11: #{tpu_custom_call.1} parent=1 // pred_check_branch
      %15 = sbr.rel (0) target = $region13
    $region12: #{tpu_custom_call.1} parent=1 // pred_region
      _
    $region13: #{tpu_custom_call.1} parent=1 // pred_fallthru
      _
    // Predicated region
    $region14: #{tpu_custom_call.1} parent=1 // pred_check
      _
    $region15: #{tpu_custom_call.1} parent=1 // pred_check_branch
      %17 = sbr.rel (0) target = $region17
    $region16: #{tpu_custom_call.1} parent=1 // pred_region
      _
    $region17: #{tpu_custom_call.1} parent=1 // pred_fallthru
      _
    %v18 = vld [vmem:[%s2] sm:$0xff]
    %v19 = vld [vmem:[%s2 + $0x8] sm:$0xff]
    %v20 = vld [vmem:[%s2 + $0x10] sm:$0xff]
    %v21 = vld [vmem:[%s2 + $0x18] sm:$0xff]
    %v22 = vld [vmem:[%s2 + $0x20] sm:$0xff]
    %v23 = vld [vmem:[%s2 + $0x28] sm:$0xff]
    %v24 = vld [vmem:[%s2 + $0x30] sm:$0xff]
    %v25 = vld [vmem:[%s2 + $0x38] sm:$0xff]
    %v26 = vld [vmem:[%s3] sm:$0xff]
    %v27 = vld [vmem:[%s3 + $0x8] sm:$0xff]
    %v28 = vld [vmem:[%s3 + $0x10] sm:$0xff]
    %v29 = vld [vmem:[%s3 + $0x18] sm:$0xff]
    %v30 = vld [vmem:[%s3 + $0x20] sm:$0xff]
    %v31 = vld [vmem:[%s3 + $0x28] sm:$0xff]
    %v32 = vlaneseq
    %v33 = vshrl.u32 %v32, 7
    %v34 = vadd.s32 %v33, 8
    %v35 = vlaneseq
    %v36 = vand.u32 %v35, 127
    %vm37 = vcmp.eq.s32.totalorder %v33, %v36
    %vm38 = vcmp.eq.s32.totalorder %v34, %v36
    %v39 = vld [vmem:[%s0] sm:$0xff]
    %v40 = vld [vmem:[%s0 + $0x8] sm:$0xff]
    %v41 = vld [vmem:[%s0 + $0x10] sm:$0xff]
    %v42 = vld [vmem:[%s0 + $0x18] sm:$0xff]
    %v43 = vld [vmem:[%s1] sm:$0xff]
    %v44 = vld [vmem:[%s1 + $0x8] sm:$0xff]
    %v45 = vld [vmem:[%s1 + $0x10] sm:$0xff]
    %v46 = vld [vmem:[%s1 + $0x18] sm:$0xff]
    %v47 = vadd.f32 %v39, %v40
    %48 = vadd.xlane.f32.xlu0 %v47
    %v49 = vpop.xlane.xlu0 %48
    %v50 = vadd.f32 %v41, %v42
    %51 = vadd.xlane.f32.xlu0 %v50
    %v52 = vpop.xlane.xlu0 %51
    %v53 = vmul.f32 %v49, 0.00390625
    %v54 = vmul.f32 %v52, 0.00390625
    %v55 = vadd.f32 %v43, %v44
    %56 = vadd.xlane.f32.xlu0 %v55
    %v57 = vpop.xlane.xlu0 %56
    %v58 = vadd.f32 %v45, %v46
    %59 = vadd.xlane.f32.xlu0 %v58
    %v60 = vpop.xlane.xlu0 %59
    %v61 = vmul.f32 %v57, 0.00390625
    %v62 = vmul.f32 %v60, 0.00390625
    %vm63 = vcmask 261120
    %v65 = vsel %vm63, %v18, 0
    %v68 = vsel %vm63, %v19, 0
    %v71 = vsel %vm63, %v20, 0
    %v74 = vsel %vm63, %v21, 0
    %76 = vmatprep.subr.mxu0 0.0
    %77 = vmatpush1.msra.mxu0 %v53
    %78 = vmatprep.subr.mxu0 0.0
    %79 = vmatpush1.msra.mxu0 %v54
    %80 = vmatprep.subr.mxu0 0.0
    %81 = vmatpush1.msra.mxu0 %v61
    %82 = vmatprep.subr.mxu0 0.0
    %83 = vmatpush1.msra.mxu0 %v62
    %84 = vmatprep.subr.mxu0 0.0
    %85 = vmatpush1.msra.mxu0 0.0
    %86 = vmatprep.subr.mxu0 0.0
    %87 = vmatpush1.msra.mxu0 0.0
    %88 = vmatprep.subr.mxu0 0.0
    %89 = vmatpush1.msra.mxu0 0.0
    %90 = vmatprep.subr.mxu0 0.0
    %91 = vmatpush1.msra.mxu0 0.0
    %92 = vmatprep.subr.mxu0 0.0
    %93 = vmatpush1.msra.mxu0 0.0
    %94 = vmatprep.subr.mxu0 0.0
    %95 = vmatpush1.msra.mxu0 0.0
    %96 = vmatprep.subr.mxu0 0.0
    %97 = vmatpush1.msra.mxu0 0.0
    %98 = vmatprep.subr.mxu0 0.0
    %99 = vmatpush1.msra.mxu0 0.0
    %100 = vmatprep.subr.mxu0 0.0
    %101 = vmatpush1.msra.mxu0 0.0
    %102 = vmatprep.subr.mxu0 0.0
    %103 = vmatpush1.msra.mxu0 0.0
    %104 = vmatprep.subr.mxu0 0.0
    %105 = vmatpush1.msra.mxu0 0.0
    %106 = vmatprep.subr.mxu0 0.0
    %107 = vmatpush1.msra.mxu0 0.0
    %108 = vmatprep.subr.mxu0 0.0
    %109 = vmatpush1.msra.mxu0 0.0
    %110 = vmatprep.subr.mxu0 0.0
    %111 = vmatpush1.msra.mxu0 0.0
    %112 = vmatprep.subr.mxu0 0.0
    %113 = vmatpush1.msra.mxu0 0.0
    %114 = vmatprep.subr.mxu0 0.0
    %115 = vmatpush1.msra.mxu0 0.0
    %116 = vmatprep.subr.mxu0 0.0
    %117 = vmatpush1.msra.mxu0 0.0
    %118 = vmatprep.subr.mxu0 0.0
    %119 = vmatpush1.msra.mxu0 0.0
    %120 = vmatprep.subr.mxu0 0.0
    %121 = vmatpush1.msra.mxu0 0.0
    %122 = vmatprep.subr.mxu0 0.0
    %123 = vmatpush1.msra.mxu0 0.0
    %124 = vmatprep.subr.mxu0 0.0
    %125 = vmatpush1.msra.mxu0 0.0
    %126 = vmatprep.subr.mxu0 0.0
    %127 = vmatpush1.msra.mxu0 0.0
    %128 = vmatprep.subr.mxu0 0.0
    %129 = vmatpush1.msra.mxu0 0.0
    %130 = vmatprep.subr.mxu0 0.0
    %131 = vmatpush1.msra.mxu0 0.0
    %132 = vmatprep.subr.mxu0 0.0
    %133 = vmatpush1.msra.mxu0 0.0
    %134 = vmatprep.subr.mxu0 0.0
    %135 = vmatpush1.msra.mxu0 0.0
    %136 = vmatprep.subr.mxu0 0.0
    %137 = vmatpush1.msra.mxu0 0.0
    %138 = vmatprep.subr.mxu0 0.0
    %139 = vmatpush1.msra.mxu0 0.0
    %140 = vmatprep.mubr.f32.mxu0 0.0
    %141 = vmatmul.mubr.f32.gmra.mrb[0].mxu0 %v65
    %v142 = vpop.f32.mrb[0].mxu0
    %v143 = vadd.f32 %v26, %v142
    %v144 = vpop.f32.mrb[0].mxu0
    %145 = vmatprep.mubr.f32.mxu0 0.0
    %146 = vmatmul.mubr.f32.gmra.mrb[0].mxu0 %v68
    %v147 = vpop.f32.mrb[0].mxu0
    %v148 = vadd.f32 %v27, %v147
    %v149 = vpop.f32.mrb[0].mxu0
    %150 = vmatprep.mubr.f32.mxu0 0.0
    %151 = vmatmul.mubr.f32.gmra.mrb[0].mxu0 %v71
    %v152 = vpop.f32.mrb[0].mxu0
    %v153 = vadd.f32 %v28, %v152
    %v154 = vpop.f32.mrb[0].mxu0
    %155 = vmatprep.mubr.f32.mxu0 0.0
    %156 = vmatmul.mubr.f32.gmra.mrb[0].mxu0 %v74
    %v157 = vpop.f32.mrb[0].mxu0
    %v158 = vadd.f32 %v29, %v157
    %v159 = vpop.f32.mrb[0].mxu0
    %160 = vdwg.mxu0
    %v161 = vsub.f32 0.0, %v143
    %v162 = vsub.f32 0.0, %v148
    %v163 = vsub.f32 0.0, %v153
    %v164 = vsub.f32 0.0, %v158
    %v165 = vmul.f32 %v161, 1.442695
    %v166 = vpow.pop %v165
    %v167 = vmul.f32 %v162, 1.442695
    %v168 = vpow.pop %v167
    %v169 = vmul.f32 %v163, 1.442695
    %v170 = vpow.pop %v169
    %v171 = vmul.f32 %v164, 1.442695
    %v172 = vpow.pop %v171
    %v173 = vadd.f32 %v166, 1.0
    %v174 = vadd.f32 %v168, 1.0
    %v175 = vadd.f32 %v170, 1.0
    %v176 = vadd.f32 %v172, 1.0
    %v177 = vrcp.pop %v173
    %v178 = vmul.f32 1.0, %v177
    %v179 = vrcp.pop %v174
    %v180 = vmul.f32 1.0, %v179
    %v181 = vrcp.pop %v175
    %v182 = vmul.f32 1.0, %v181
    %v183 = vrcp.pop %v176
    %v184 = vmul.f32 1.0, %v183
    %186 = vset.pattern.permute.xlu0 0
    %187 = vperm.xlu0 %186, %v178
    %v188 = vpop.permute.xlu0 %187
    %191 = vset.pattern.permute.xlu0 0
    %192 = vperm.xlu0 %191, %v180
    %v193 = vpop.permute.xlu0 %192
    %v195 = vsel %vm37, %v188, 0.0
    %v196 = vsel %vm38, %v193, 0.0
    %vm197 = vcmask 130048
    %v198 = vsel %vm197, %v195, 0.0
    %v199 = vsel %vm197, %v196, 0.0
    %v200 = vadd.f32 %v198, %v199
    %v201 = vrot.slane %v200, 4
    %v202 = vadd.f32 %v200, %v201
    %v203 = vrot.slane %v202, 2
    %v204 = vadd.f32 %v202, %v203
    %v205 = vrot.slane %v204, 1
    %v206 = vadd.f32 %v204, %v205
    %208 = vset.pattern.permute.xlu0 0
    %209 = vperm.xlu0 %208, %v182
    %v210 = vpop.permute.xlu0 %209
    %213 = vset.pattern.permute.xlu0 0
    %214 = vperm.xlu0 %213, %v184
    %v215 = vpop.permute.xlu0 %214
    %v217 = vsel %vm37, %v210, 0.0
    %v218 = vsel %vm38, %v215, 0.0
    %v219 = vsel %vm197, %v217, 0.0
    %v220 = vsel %vm197, %v218, 0.0
    %v221 = vadd.f32 %v219, %v220
    %v222 = vrot.slane %v221, 4
    %v223 = vadd.f32 %v221, %v222
    %v224 = vrot.slane %v223, 2
    %v225 = vadd.f32 %v223, %v224
    %v226 = vrot.slane %v225, 1
    %v227 = vadd.f32 %v225, %v226
    %v228 = vmul.f32 %v22, %v227
    %v229 = vmul.f32 %v23, %v227
    %v230 = vmul.f32 %v24, %v206
    %v231 = vmul.f32 %v25, %v206
    %v233 = vsel %vm197, %v230, 0
    %v236 = vsel %vm197, %v231, 0
    %238 = vmatprep.subr.mxu0 %v44
    %239 = vmatpush1.msra.mxu0 %v43
    %240 = vmatprep.subr.mxu0 %v46
    %241 = vmatpush1.msra.mxu0 %v45
    %242 = vmatprep.subr.mxu0 0.0
    %243 = vmatpush1.msra.mxu0 0.0
    %244 = vmatprep.subr.mxu0 0.0
    %245 = vmatpush1.msra.mxu0 0.0
    %246 = vmatprep.subr.mxu0 0.0
    %247 = vmatpush1.msra.mxu0 0.0
    %248 = vmatprep.subr.mxu0 0.0
    %249 = vmatpush1.msra.mxu0 0.0
    %250 = vmatprep.subr.mxu0 0.0
    %251 = vmatpush1.msra.mxu0 0.0
    %252 = vmatprep.subr.mxu0 0.0
    %253 = vmatpush1.msra.mxu0 0.0
    %254 = vmatprep.subr.mxu0 0.0
    %255 = vmatpush1.msra.mxu0 0.0
    %256 = vmatprep.subr.mxu0 0.0
    %257 = vmatpush1.msra.mxu0 0.0
    %258 = vmatprep.subr.mxu0 0.0
    %259 = vmatpush1.msra.mxu0 0.0
    %260 = vmatprep.subr.mxu0 0.0
    %261 = vmatpush1.msra.mxu0 0.0
    %262 = vmatprep.subr.mxu0 0.0
    %263 = vmatpush1.msra.mxu0 0.0
    %264 = vmatprep.subr.mxu0 0.0
    %265 = vmatpush1.msra.mxu0 0.0
    %266 = vmatprep.subr.mxu0 0.0
    %267 = vmatpush1.msra.mxu0 0.0
    %268 = vmatprep.subr.mxu0 0.0
    %269 = vmatpush1.msra.mxu0 0.0
    %270 = vmatprep.subr.mxu0 0.0
    %271 = vmatpush1.msra.mxu0 0.0
    %272 = vmatprep.subr.mxu0 0.0
    %273 = vmatpush1.msra.mxu0 0.0
    %274 = vmatprep.subr.mxu0 0.0
    %275 = vmatpush1.msra.mxu0 0.0
    %276 = vmatprep.subr.mxu0 0.0
    %277 = vmatpush1.msra.mxu0 0.0
    %278 = vmatprep.subr.mxu0 0.0
    %279 = vmatpush1.msra.mxu0 0.0
    %280 = vmatprep.subr.mxu0 0.0
    %281 = vmatpush1.msra.mxu0 0.0
    %282 = vmatprep.subr.mxu0 0.0
    %283 = vmatpush1.msra.mxu0 0.0
    %284 = vmatprep.subr.mxu0 0.0
    %285 = vmatpush1.msra.mxu0 0.0
    %286 = vmatprep.subr.mxu0 0.0
    %287 = vmatpush1.msra.mxu0 0.0
    %288 = vmatprep.subr.mxu0 0.0
    %289 = vmatpush1.msra.mxu0 0.0
    %290 = vmatprep.subr.mxu0 0.0
    %291 = vmatpush1.msra.mxu0 0.0
    %292 = vmatprep.subr.mxu0 0.0
    %293 = vmatpush1.msra.mxu0 0.0
    %294 = vmatprep.subr.mxu0 0.0
    %295 = vmatpush1.msra.mxu0 0.0
    %296 = vmatprep.subr.mxu0 0.0
    %297 = vmatpush1.msra.mxu0 0.0
    %298 = vmatprep.subr.mxu0 0.0
    %299 = vmatpush1.msra.mxu0 0.0
    %300 = vmatprep.subr.mxu0 0.0
    %301 = vmatpush1.msra.mxu0 0.0
    %302 = vmatprep.mubr.f32.mxu0 0.0
    %303 = vmatmul.mubr.f32.gmra.mrb[0].mxu0 %v233
    %v304 = vpop.f32.mrb[0].mxu0
    %v305 = vadd.f32 0.0, %v304
    %v306 = vpop.f32.mrb[0].mxu0
    %v307 = vadd.f32 0.0, %v306
    %308 = vmatprep.mubr.f32.mxu0 0.0
    %309 = vmatmul.mubr.f32.gmra.mrb[0].mxu0 %v236
    %v310 = vpop.f32.mrb[0].mxu0
    %v311 = vadd.f32 0.0, %v310
    %v312 = vpop.f32.mrb[0].mxu0
    %v313 = vadd.f32 0.0, %v312
    %314 = vdwg.mxu0
    %v316 = vsel %vm197, %v228, 0
    %v319 = vsel %vm197, %v229, 0
    %321 = vmatprep.subr.mxu0 %v40
    %322 = vmatpush1.msra.mxu0 %v39
    %323 = vmatprep.subr.mxu0 %v42
    %324 = vmatpush1.msra.mxu0 %v41
    %325 = vmatprep.subr.mxu0 0.0
    %326 = vmatpush1.msra.mxu0 0.0
    %327 = vmatprep.subr.mxu0 0.0
    %328 = vmatpush1.msra.mxu0 0.0
    %329 = vmatprep.subr.mxu0 0.0
    %330 = vmatpush1.msra.mxu0 0.0
    %331 = vmatprep.subr.mxu0 0.0
    %332 = vmatpush1.msra.mxu0 0.0
    %333 = vmatprep.subr.mxu0 0.0
    %334 = vmatpush1.msra.mxu0 0.0
    %335 = vmatprep.subr.mxu0 0.0
    %336 = vmatpush1.msra.mxu0 0.0
    %337 = vmatprep.subr.mxu0 0.0
    %338 = vmatpush1.msra.mxu0 0.0
    %339 = vmatprep.subr.mxu0 0.0
    %340 = vmatpush1.msra.mxu0 0.0
    %341 = vmatprep.subr.mxu0 0.0
    %342 = vmatpush1.msra.mxu0 0.0
    %343 = vmatprep.subr.mxu0 0.0
    %344 = vmatpush1.msra.mxu0 0.0
    %345 = vmatprep.subr.mxu0 0.0
    %346 = vmatpush1.msra.mxu0 0.0
    %347 = vmatprep.subr.mxu0 0.0
    %348 = vmatpush1.msra.mxu0 0.0
    %349 = vmatprep.subr.mxu0 0.0
    %350 = vmatpush1.msra.mxu0 0.0
    %351 = vmatprep.subr.mxu0 0.0
    %352 = vmatpush1.msra.mxu0 0.0
    %353 = vmatprep.subr.mxu0 0.0
    %354 = vmatpush1.msra.mxu0 0.0
    %355 = vmatprep.subr.mxu0 0.0
    %356 = vmatpush1.msra.mxu0 0.0
    %357 = vmatprep.subr.mxu0 0.0
    %358 = vmatpush1.msra.mxu0 0.0
    %359 = vmatprep.subr.mxu0 0.0
    %360 = vmatpush1.msra.mxu0 0.0
    %361 = vmatprep.subr.mxu0 0.0
    %362 = vmatpush1.msra.mxu0 0.0
    %363 = vmatprep.subr.mxu0 0.0
    %364 = vmatpush1.msra.mxu0 0.0
    %365 = vmatprep.subr.mxu0 0.0
    %366 = vmatpush1.msra.mxu0 0.0
    %367 = vmatprep.subr.mxu0 0.0
    %368 = vmatpush1.msra.mxu0 0.0
    %369 = vmatprep.subr.mxu0 0.0
    %370 = vmatpush1.msra.mxu0 0.0
    %371 = vmatprep.subr.mxu0 0.0
    %372 = vmatpush1.msra.mxu0 0.0
    %373 = vmatprep.subr.mxu0 0.0
    %374 = vmatpush1.msra.mxu0 0.0
    %375 = vmatprep.subr.mxu0 0.0
    %376 = vmatpush1.msra.mxu0 0.0
    %377 = vmatprep.subr.mxu0 0.0
    %378 = vmatpush1.msra.mxu0 0.0
    %379 = vmatprep.subr.mxu0 0.0
    %380 = vmatpush1.msra.mxu0 0.0
    %381 = vmatprep.subr.mxu0 0.0
    %382 = vmatpush1.msra.mxu0 0.0
    %383 = vmatprep.subr.mxu0 0.0
    %384 = vmatpush1.msra.mxu0 0.0
    %385 = vmatprep.mubr.f32.mxu0 0.0
    %386 = vmatmul.mubr.f32.gmra.mrb[0].mxu0 %v316
    %v387 = vpop.f32.mrb[0].mxu0
    %v388 = vadd.f32 %v305, %v387
    %v389 = vpop.f32.mrb[0].mxu0
    %v390 = vadd.f32 %v307, %v389
    %391 = vmatprep.mubr.f32.mxu0 0.0
    %392 = vmatmul.mubr.f32.gmra.mrb[0].mxu0 %v319
    %v393 = vpop.f32.mrb[0].mxu0
    %v394 = vadd.f32 %v311, %v393
    %v395 = vpop.f32.mrb[0].mxu0
    %v396 = vadd.f32 %v313, %v395
    %397 = vdwg.mxu0
    %399 = vset.pattern.permute.xlu0 0
    %400 = vperm.xlu0 %399, %v30
    %v401 = vpop.permute.xlu0 %400
    %404 = vset.pattern.permute.xlu0 0
    %405 = vperm.xlu0 %404, %v31
    %v406 = vpop.permute.xlu0 %405
    %v408 = vadd.f32 %v388, %v401
    %v409 = vadd.f32 %v390, %v401
    %v410 = vadd.f32 %v394, %v406
    %v411 = vadd.f32 %v396, %v406
    %412 = vst [vmem:[#allocation2] sm:$0xff] %v408
    %413 = vst [vmem:[#allocation2 + $0x8] sm:$0xff] %v409
    %414 = vst [vmem:[#allocation2 + $0x10] sm:$0xff] %v410
    %415 = vst [vmem:[#allocation2 + $0x18] sm:$0xff] %v411
    %s416 = scalar_lea.vmem %s0, 32
    %v417 = vld [vmem:[%s416] sm:$0xff]
    %v418 = vld [vmem:[%s416 + $0x8] sm:$0xff]
    %v419 = vld [vmem:[%s416 + $0x10] sm:$0xff]
    %v420 = vld [vmem:[%s416 + $0x18] sm:$0xff]
    %s421 = scalar_lea.vmem %s1, 32
    %v422 = vld [vmem:[%s421] sm:$0xff]
    %v423 = vld [vmem:[%s421 + $0x8] sm:$0xff]
    %v424 = vld [vmem:[%s421 + $0x10] sm:$0xff]
    %v425 = vld [vmem:[%s421 + $0x18] sm:$0xff]
    %v426 = vadd.f32 %v417, %v418
    %427 = vadd.xlane.f32.xlu0 %v426
    %v428 = vpop.xlane.xlu0 %427
    %v429 = vadd.f32 %v419, %v420
    %430 = vadd.xlane.f32.xlu0 %v429
    %v431 = vpop.xlane.xlu0 %430
    %v432 = vmul.f32 %v428, 0.00390625
    %v433 = vmul.f32 %v431, 0.00390625
    %v434 = vadd.f32 %v422, %v423
    %435 = vadd.xlane.f32.xlu0 %v434
    %v436 = vpop.xlane.xlu0 %435
    %v437 = vadd.f32 %v424, %v425
    %438 = vadd.xlane.f32.xlu0 %v437
    %v439 = vpop.xlane.xlu0 %438
    %v440 = vmul.f32 %v436, 0.00390625
    %v441 = vmul.f32 %v439, 0.00390625
    %442 = vmatprep.subr.mxu0 0.0
    %443 = vmatpush1.msra.mxu0 %v432
    %444 = vmatprep.subr.mxu0 0.0
    %445 = vmatpush1.msra.mxu0 %v433
    %446 = vmatprep.subr.mxu0 0.0
    %447 = vmatpush1.msra.mxu0 %v440
    %448 = vmatprep.subr.mxu0 0.0
    %449 = vmatpush1.msra.mxu0 %v441
    %450 = vmatprep.subr.mxu0 0.0
    %451 = vmatpush1.msra.mxu0 0.0
    %452 = vmatprep.subr.mxu0 0.0
    %453 = vmatpush1.msra.mxu0 0.0
    %454 = vmatprep.subr.mxu0 0.0
    %455 = vmatpush1.msra.mxu0 0.0
    %456 = vmatprep.subr.mxu0 0.0
    %457 = vmatpush1.msra.mxu0 0.0
    %458 = vmatprep.subr.mxu0 0.0
    %459 = vmatpush1.msra.mxu0 0.0
    %460 = vmatprep.subr.mxu0 0.0
    %461 = vmatpush1.msra.mxu0 0.0
    %462 = vmatprep.subr.mxu0 0.0
    %463 = vmatpush1.msra.mxu0 0.0
    %464 = vmatprep.subr.mxu0 0.0
    %465 = vmatpush1.msra.mxu0 0.0
    %466 = vmatprep.subr.mxu0 0.0
    %467 = vmatpush1.msra.mxu0 0.0
    %468 = vmatprep.subr.mxu0 0.0
    %469 = vmatpush1.msra.mxu0 0.0
    %470 = vmatprep.subr.mxu0 0.0
    %471 = vmatpush1.msra.mxu0 0.0
    %472 = vmatprep.subr.mxu0 0.0
    %473 = vmatpush1.msra.mxu0 0.0
    %474 = vmatprep.subr.mxu0 0.0
    %475 = vmatpush1.msra.mxu0 0.0
    %476 = vmatprep.subr.mxu0 0.0
    %477 = vmatpush1.msra.mxu0 0.0
    %478 = vmatprep.subr.mxu0 0.0
    %479 = vmatpush1.msra.mxu0 0.0
    %480 = vmatprep.subr.mxu0 0.0
    %481 = vmatpush1.msra.mxu0 0.0
    %482 = vmatprep.subr.mxu0 0.0
    %483 = vmatpush1.msra.mxu0 0.0
    %484 = vmatprep.subr.mxu0 0.0
    %485 = vmatpush1.msra.mxu0 0.0
    %486 = vmatprep.subr.mxu0 0.0
    %487 = vmatpush1.msra.mxu0 0.0
    %488 = vmatprep.subr.mxu0 0.0
    %489 = vmatpush1.msra.mxu0 0.0
    %490 = vmatprep.subr.mxu0 0.0
    %491 = vmatpush1.msra.mxu0 0.0
    %492 = vmatprep.subr.mxu0 0.0
    %493 = vmatpush1.msra.mxu0 0.0
    %494 = vmatprep.subr.mxu0 0.0
    %495 = vmatpush1.msra.mxu0 0.0
    %496 = vmatprep.subr.mxu0 0.0
    %497 = vmatpush1.msra.mxu0 0.0
    %498 = vmatprep.subr.mxu0 0.0
    %499 = vmatpush1.msra.mxu0 0.0
    %500 = vmatprep.subr.mxu0 0.0
    %501 = vmatpush1.msra.mxu0 0.0
    %502 = vmatprep.subr.mxu0 0.0
    %503 = vmatpush1.msra.mxu0 0.0
    %504 = vmatprep.subr.mxu0 0.0
    %505 = vmatpush1.msra.mxu0 0.0
    %506 = vmatprep.mubr.f32.mxu0 0.0
    %507 = vmatmul.mubr.f32.gmra.mrb[0].mxu0 %v65
    %v508 = vpop.f32.mrb[0].mxu0
    %v509 = vadd.f32 %v26, %v508
    %v510 = vpop.f32.mrb[0].mxu0
    %511 = vmatprep.mubr.f32.mxu0 0.0
    %512 = vmatmul.mubr.f32.gmra.mrb[0].mxu0 %v68
    %v513 = vpop.f32.mrb[0].mxu0
    %v514 = vadd.f32 %v27, %v513
    %v515 = vpop.f32.mrb[0].mxu0
    %516 = vmatprep.mubr.f32.mxu0 0.0
    %517 = vmatmul.mubr.f32.gmra.mrb[0].mxu0 %v71
    %v518 = vpop.f32.mrb[0].mxu0
    %v519 = vadd.f32 %v28, %v518
    %v520 = vpop.f32.mrb[0].mxu0
    %521 = vmatprep.mubr.f32.mxu0 0.0
    %522 = vmatmul.mubr.f32.gmra.mrb[0].mxu0 %v74
    %v523 = vpop.f32.mrb[0].mxu0
    %v524 = vadd.f32 %v29, %v523
    %v525 = vpop.f32.mrb[0].mxu0
    %526 = vdwg.mxu0
    %v527 = vsub.f32 0.0, %v509
    %v528 = vsub.f32 0.0, %v514
    %v529 = vsub.f32 0.0, %v519
    %v530 = vsub.f32 0.0, %v524
    %v531 = vmul.f32 %v527, 1.442695
    %v532 = vpow.pop %v531
    %v533 = vmul.f32 %v528, 1.442695
    %v534 = vpow.pop %v533
    %v535 = vmul.f32 %v529, 1.442695
    %v536 = vpow.pop %v535
    %v537 = vmul.f32 %v530, 1.442695
    %v538 = vpow.pop %v537
    %v539 = vadd.f32 %v532, 1.0
    %v540 = vadd.f32 %v534, 1.0
    %v541 = vadd.f32 %v536, 1.0
    %v542 = vadd.f32 %v538, 1.0
    %v543 = vrcp.pop %v539
    %v544 = vmul.f32 1.0, %v543
    %v545 = vrcp.pop %v540
    %v546 = vmul.f32 1.0, %v545
    %v547 = vrcp.pop %v541
    %v548 = vmul.f32 1.0, %v547
    %v549 = vrcp.pop %v542
    %v550 = vmul.f32 1.0, %v549
    %552 = vset.pattern.permute.xlu0 0
    %553 = vperm.xlu0 %552, %v544
    %v554 = vpop.permute.xlu0 %553
    %557 = vset.pattern.permute.xlu0 0
    %558 = vperm.xlu0 %557, %v546
    %v559 = vpop.permute.xlu0 %558
    %v561 = vsel %vm37, %v554, 0.0
    %v562 = vsel %vm38, %v559, 0.0
    %v563 = vsel %vm197, %v561, 0.0
    %v564 = vsel %vm197, %v562, 0.0
    %v565 = vadd.f32 %v563, %v564
    %v566 = vrot.slane %v565, 4
    %v567 = vadd.f32 %v565, %v566
    %v568 = vrot.slane %v567, 2
    %v569 = vadd.f32 %v567, %v568
    %v570 = vrot.slane %v569, 1
    %v571 = vadd.f32 %v569, %v570
    %573 = vset.pattern.permute.xlu0 0
    %574 = vperm.xlu0 %573, %v548
    %v575 = vpop.permute.xlu0 %574
    %578 = vset.pattern.permute.xlu0 0
    %579 = vperm.xlu0 %578, %v550
    %v580 = vpop.permute.xlu0 %579
    %v582 = vsel %vm37, %v575, 0.0
    %v583 = vsel %vm38, %v580, 0.0
    %v584 = vsel %vm197, %v582, 0.0
    %v585 = vsel %vm197, %v583, 0.0
    %v586 = vadd.f32 %v584, %v585
    %v587 = vrot.slane %v586, 4
    %v588 = vadd.f32 %v586, %v587
    %v589 = vrot.slane %v588, 2
    %v590 = vadd.f32 %v588, %v589
    %v591 = vrot.slane %v590, 1
    %v592 = vadd.f32 %v590, %v591
    %v593 = vmul.f32 %v22, %v592
    %v594 = vmul.f32 %v23, %v592
    %v595 = vmul.f32 %v24, %v571
    %v596 = vmul.f32 %v25, %v571
    %v598 = vsel %vm197, %v595, 0
    %v601 = vsel %vm197, %v596, 0
    %603 = vmatprep.subr.mxu0 %v423
    %604 = vmatpush1.msra.mxu0 %v422
    %605 = vmatprep.subr.mxu0 %v425
    %606 = vmatpush1.msra.mxu0 %v424
    %607 = vmatprep.subr.mxu0 0.0
    %608 = vmatpush1.msra.mxu0 0.0
    %609 = vmatprep.subr.mxu0 0.0
    %610 = vmatpush1.msra.mxu0 0.0
    %611 = vmatprep.subr.mxu0 0.0
    %612 = vmatpush1.msra.mxu0 0.0
    %613 = vmatprep.subr.mxu0 0.0
    %614 = vmatpush1.msra.mxu0 0.0
    %615 = vmatprep.subr.mxu0 0.0
    %616 = vmatpush1.msra.mxu0 0.0
    %617 = vmatprep.subr.mxu0 0.0
    %618 = vmatpush1.msra.mxu0 0.0
    %619 = vmatprep.subr.mxu0 0.0
    %620 = vmatpush1.msra.mxu0 0.0
    %621 = vmatprep.subr.mxu0 0.0
    %622 = vmatpush1.msra.mxu0 0.0
    %623 = vmatprep.subr.mxu0 0.0
    %624 = vmatpush1.msra.mxu0 0.0
    %625 = vmatprep.subr.mxu0 0.0
    %626 = vmatpush1.msra.mxu0 0.0
    %627 = vmatprep.subr.mxu0 0.0
    %628 = vmatpush1.msra.mxu0 0.0
    %629 = vmatprep.subr.mxu0 0.0
    %630 = vmatpush1.msra.mxu0 0.0
    %631 = vmatprep.subr.mxu0 0.0
    %632 = vmatpush1.msra.mxu0 0.0
    %633 = vmatprep.subr.mxu0 0.0
    %634 = vmatpush1.msra.mxu0 0.0
    %635 = vmatprep.subr.mxu0 0.0
    %636 = vmatpush1.msra.mxu0 0.0
    %637 = vmatprep.subr.mxu0 0.0
    %638 = vmatpush1.msra.mxu0 0.0
    %639 = vmatprep.subr.mxu0 0.0
    %640 = vmatpush1.msra.mxu0 0.0
    %641 = vmatprep.subr.mxu0 0.0
    %642 = vmatpush1.msra.mxu0 0.0
    %643 = vmatprep.subr.mxu0 0.0
    %644 = vmatpush1.msra.mxu0 0.0
    %645 = vmatprep.subr.mxu0 0.0
    %646 = vmatpush1.msra.mxu0 0.0
    %647 = vmatprep.subr.mxu0 0.0
    %648 = vmatpush1.msra.mxu0 0.0
    %649 = vmatprep.subr.mxu0 0.0
    %650 = vmatpush1.msra.mxu0 0.0
    %651 = vmatprep.subr.mxu0 0.0
    %652 = vmatpush1.msra.mxu0 0.0
    %653 = vmatprep.subr.mxu0 0.0
    %654 = vmatpush1.msra.mxu0 0.0
    %655 = vmatprep.subr.mxu0 0.0
    %656 = vmatpush1.msra.mxu0 0.0
    %657 = vmatprep.subr.mxu0 0.0
    %658 = vmatpush1.msra.mxu0 0.0
    %659 = vmatprep.subr.mxu0 0.0
    %660 = vmatpush1.msra.mxu0 0.0
    %661 = vmatprep.subr.mxu0 0.0
    %662 = vmatpush1.msra.mxu0 0.0
    %663 = vmatprep.subr.mxu0 0.0
    %664 = vmatpush1.msra.mxu0 0.0
    %665 = vmatprep.subr.mxu0 0.0
    %666 = vmatpush1.msra.mxu0 0.0
    %667 = vmatprep.mubr.f32.mxu0 0.0
    %668 = vmatmul.mubr.f32.gmra.mrb[0].mxu0 %v598
    %v669 = vpop.f32.mrb[0].mxu0
    %v670 = vadd.f32 0.0, %v669
    %v671 = vpop.f32.mrb[0].mxu0
    %v672 = vadd.f32 0.0, %v671
    %673 = vmatprep.mubr.f32.mxu0 0.0
    %674 = vmatmul.mubr.f32.gmra.mrb[0].mxu0 %v601
    %v675 = vpop.f32.mrb[0].mxu0
    %v676 = vadd.f32 0.0, %v675
    %v677 = vpop.f32.mrb[0].mxu0
    %v678 = vadd.f32 0.0, %v677
    %679 = vdwg.mxu0
    %v681 = vsel %vm197, %v593, 0
    %v684 = vsel %vm197, %v594, 0
    %686 = vmatprep.subr.mxu0 %v418
    %687 = vmatpush1.msra.mxu0 %v417
    %688 = vmatprep.subr.mxu0 %v420
    %689 = vmatpush1.msra.mxu0 %v419
    %690 = vmatprep.subr.mxu0 0.0
    %691 = vmatpush1.msra.mxu0 0.0
    %692 = vmatprep.subr.mxu0 0.0
    %693 = vmatpush1.msra.mxu0 0.0
    %694 = vmatprep.subr.mxu0 0.0
    %695 = vmatpush1.msra.mxu0 0.0
    %696 = vmatprep.subr.mxu0 0.0
    %697 = vmatpush1.msra.mxu0 0.0
    %698 = vmatprep.subr.mxu0 0.0
    %699 = vmatpush1.msra.mxu0 0.0
    %700 = vmatprep.subr.mxu0 0.0
    %701 = vmatpush1.msra.mxu0 0.0
    %702 = vmatprep.subr.mxu0 0.0
    %703 = vmatpush1.msra.mxu0 0.0
    %704 = vmatprep.subr.mxu0 0.0
    %705 = vmatpush1.msra.mxu0 0.0
    %706 = vmatprep.subr.mxu0 0.0
    %707 = vmatpush1.msra.mxu0 0.0
    %708 = vmatprep.subr.mxu0 0.0
    %709 = vmatpush1.msra.mxu0 0.0
    %710 = vmatprep.subr.mxu0 0.0
    %711 = vmatpush1.msra.mxu0 0.0
    %712 = vmatprep.subr.mxu0 0.0
    %713 = vmatpush1.msra.mxu0 0.0
    %714 = vmatprep.subr.mxu0 0.0
    %715 = vmatpush1.msra.mxu0 0.0
    %716 = vmatprep.subr.mxu0 0.0
    %717 = vmatpush1.msra.mxu0 0.0
    %718 = vmatprep.subr.mxu0 0.0
    %719 = vmatpush1.msra.mxu0 0.0
    %720 = vmatprep.subr.mxu0 0.0
    %721 = vmatpush1.msra.mxu0 0.0
    %722 = vmatprep.subr.mxu0 0.0
    %723 = vmatpush1.msra.mxu0 0.0
    %724 = vmatprep.subr.mxu0 0.0
    %725 = vmatpush1.msra.mxu0 0.0
    %726 = vmatprep.subr.mxu0 0.0
    %727 = vmatpush1.msra.mxu0 0.0
    %728 = vmatprep.subr.mxu0 0.0
    %729 = vmatpush1.msra.mxu0 0.0
    %730 = vmatprep.subr.mxu0 0.0
    %731 = vmatpush1.msra.mxu0 0.0
    %732 = vmatprep.subr.mxu0 0.0
    %733 = vmatpush1.msra.mxu0 0.0
    %734 = vmatprep.subr.mxu0 0.0
    %735 = vmatpush1.msra.mxu0 0.0
    %736 = vmatprep.subr.mxu0 0.0
    %737 = vmatpush1.msra.mxu0 0.0
    %738 = vmatprep.subr.mxu0 0.0
    %739 = vmatpush1.msra.mxu0 0.0
    %740 = vmatprep.subr.mxu0 0.0
    %741 = vmatpush1.msra.mxu0 0.0
    %742 = vmatprep.subr.mxu0 0.0
    %743 = vmatpush1.msra.mxu0 0.0
    %744 = vmatprep.subr.mxu0 0.0
    %745 = vmatpush1.msra.mxu0 0.0
    %746 = vmatprep.subr.mxu0 0.0
    %747 = vmatpush1.msra.mxu0 0.0
    %748 = vmatprep.subr.mxu0 0.0
    %749 = vmatpush1.msra.mxu0 0.0
    %750 = vmatprep.mubr.f32.mxu0 0.0
    %751 = vmatmul.mubr.f32.gmra.mrb[0].mxu0 %v681
    %v752 = vpop.f32.mrb[0].mxu0
    %v753 = vadd.f32 %v670, %v752
    %v754 = vpop.f32.mrb[0].mxu0
    %v755 = vadd.f32 %v672, %v754
    %756 = vmatprep.mubr.f32.mxu0 0.0
    %757 = vmatmul.mubr.f32.gmra.mrb[0].mxu0 %v684
    %v758 = vpop.f32.mrb[0].mxu0
    %v759 = vadd.f32 %v676, %v758
    %v760 = vpop.f32.mrb[0].mxu0
    %v761 = vadd.f32 %v678, %v760
    %762 = vdwg.mxu0
    %v763 = vadd.f32 %v753, %v401
    %v764 = vadd.f32 %v755, %v401
    %v765 = vadd.f32 %v759, %v406
    %v766 = vadd.f32 %v761, %v406
    %s767 = scalar_lea.vmem [#allocation2], 32
    %768 = vst [vmem:[%s767] sm:$0xff] %v763
    %769 = vst [vmem:[%s767 + $0x8] sm:$0xff] %v764
    %770 = vst [vmem:[%s767 + $0x10] sm:$0xff] %v765
    %771 = vst [vmem:[%s767 + $0x18] sm:$0xff] %v766
    // Predicated region
    $region18: #{tpu_custom_call.1} parent=1 // pred_check
      _
    $region19: #{tpu_custom_call.1} parent=1 // pred_check_branch
      %773 = sbr.rel (0) target = $region21
    $region20: #{tpu_custom_call.1} parent=1 // pred_region
      %s775 = ssub.s32 1024, 1024
      %776 = vsyncadd [#allocation3], %s775
      %s777 = sshll.u32 [#allocation2], 4
      %s778 = int_to_ptr.vmem [resolvable:$true] %s777
      %783 = dma.vmem_to_hbm [thread:$0]  %s778, 1024, %s4, [#allocation3], 256, 256, 16
    $region21: #{tpu_custom_call.1} parent=1 // pred_fallthru
      _
    // Predicated region
    $region22: #{tpu_custom_call.1} parent=1 // pred_check
      _
    $region23: #{tpu_custom_call.1} parent=1 // pred_check_branch
      %785 = sbr.rel (0) target = $region25
    $region24: #{tpu_custom_call.1} parent=1 // pred_region
      %786 = dma.done [#allocation3], 1024
    $region25: #{tpu_custom_call.1} parent=1 // pred_fallthru
      _
    %787 = vsyncpa [#allocation3], 1

</llo_original>
